<compile_context>
chip_gen: v5e
topology: v5e:2x2
jax: 0.10.0
libtpu: 0.0.40
codegen_flags: <defaults>
</compile_context>

<pallas_src>
import numpy as np
import jax
import jax.numpy as jnp
from jax.experimental import pallas as pl
from jax.experimental.pallas import tpu as pltpu


# ----------------------------------------------------------------------------
# Pallas kernel: masked blend of noised / cover images
# ----------------------------------------------------------------------------
def _dropout_blend_kernel(noised_ref, cover_ref, mask_ref, o_ref):
    n = noised_ref[...]          # (tile_rows, tile_cols)
    c = cover_ref[...]           # (tile_rows, tile_cols)
    m = mask_ref[...]            # (1, tile_cols) -> broadcast over rows (VPU)
    # mask is strictly {0,1}: a select reproduces noised*m + cover*(1-m)
    # bit-exactly, with a single VPU op per element.
    o_ref[...] = jnp.where(m != 0, n, c)


def _round_up(x, m):
    return ((x + m - 1) // m) * m


def _choose_tiles(rows, cols, itemsize):
    """Pick (tile_rows, tile_cols).

    tile_cols: full column extent when small (always legal under the (8,128)
      rule), else a fixed multiple of 128; the cdiv grid masks the partial
      last block.
    tile_rows: multiple of 8, sized so one block is ~4 MiB.  With 3 streamed
      arrays double-buffered that is ~24 MiB of live VMEM -- under the
      explicit 48 MiB scoped limit below and under v7x's 64 MiB physical VMEM,
      while big enough to hit the measured 85%+ streaming roofline on v6e.
    """
    MAX_TILE_COLS = 4096
    tile_cols = cols if cols <= MAX_TILE_COLS else MAX_TILE_COLS

    per_block_bytes = 4 * 1024 * 1024
    tile_rows = (per_block_bytes // max(1, tile_cols * itemsize)) // 8 * 8
    tile_rows = max(8, tile_rows)
    tile_rows = min(tile_rows, _round_up(rows, 8))
    return tile_rows, tile_cols


@jax.jit
def dropout_blend(noised, cover, mask_hw):
    """out = where(mask, noised, cover), mask broadcast over (N, C)."""
    N, C, H, W = noised.shape
    rows, cols = N * C, H * W

    # Lane-dense 2D slabs: H*W along the lane axis gives full-width `vst`
    # write-back instead of masked partial stores (W=16 < 128 in NCHW).
    n2 = noised.reshape(rows, cols)
    c2 = cover.reshape(rows, cols)
    m2 = mask_hw.reshape(1, cols).astype(noised.dtype)

    tile_rows, tile_cols = _choose_tiles(rows, cols, noised.dtype.itemsize)
    grid = (pl.cdiv(rows, tile_rows), pl.cdiv(cols, tile_cols))

    out2 = pl.pallas_call(
        _dropout_blend_kernel,
        out_shape=jax.ShapeDtypeStruct((rows, cols), noised.dtype),
        grid_spec=pltpu.PrefetchScalarGridSpec(
            num_scalar_prefetch=0,
            grid=grid,
            in_specs=[
                pl.BlockSpec((tile_rows, tile_cols), lambda i, j: (i, j)),
                pl.BlockSpec((tile_rows, tile_cols), lambda i, j: (i, j)),
                # mask row: constant over the row axis, tiled over columns.
                pl.BlockSpec((1, tile_cols), lambda i, j: (0, j)),
            ],
            out_specs=pl.BlockSpec((tile_rows, tile_cols), lambda i, j: (i, j)),
        ),
        compiler_params=pltpu.CompilerParams(
            dimension_semantics=("parallel", "parallel"),
            vmem_limit_bytes=48 * 1024 * 1024),
    )(n2, c2, m2)

    return out2.reshape(N, C, H, W)


# ----------------------------------------------------------------------------
# Dropout module (same forward semantics as the PyTorch reference)
# ----------------------------------------------------------------------------
class Dropout:
    """Drops random pixels from the noised image and substitutes them with the
    corresponding pixels of the cover image."""

    def __init__(self, keep_ratio_range, seed=0):
        self.keep_min = keep_ratio_range[0]
        self.keep_max = keep_ratio_range[1]
        # deterministic stand-in for the module-level np.random in the reference
        self._rng = np.random.RandomState(seed)

    def __call__(self, noised_and_cover):
        noised_image = noised_and_cover[0]
        cover_image = noised_and_cover[1]
        N, C, H, W = noised_image.shape

        # Host-side RNG, like the reference.
        # TODO(synk): mask could be generated on-device with pltpu.prng_seed /
        # prng_random_bits to skip the host->device transfer, but that changes
        # the RNG stream vs. the numpy reference.
        mask_percent = float(self._rng.uniform(self.keep_min, self.keep_max))
        mask = self._rng.choice(
            [0.0, 1.0], size=(H, W),
            p=[1.0 - mask_percent, mask_percent]).astype(np.float32)

        noised_out = dropout_blend(noised_image, cover_image, jnp.asarray(mask))
        return [noised_out, cover_image]

    forward = __call__


# ----------------------------------------------------------------------------
# Demo / self-check
# ----------------------------------------------------------------------------
if __name__ == "__main__":
    key = jax.random.PRNGKey(0)
    k1, k2 = jax.random.split(key)
    N, C, H, W = 2, 4, 16, 16
    noised = jax.random.normal(k1, (N, C, H, W), dtype=jnp.float32)
    cover = jax.random.normal(k2, (N, C, H, W), dtype=jnp.float32)

    layer = Dropout((0.3, 0.7), seed=0)
    out = layer([noised, cover])
    jax.block_until_ready(out[0])

    assert out[0].shape == noised.shape and out[0].dtype == noised.dtype
    assert out[1] is cover

    # Pure-JAX reference check with the same mask the layer just drew.
    ref_rng = np.random.RandomState(0)
    p = float(ref_rng.uniform(0.3, 0.7))
    mask_np = ref_rng.choice([0.0, 1.0], size=(H, W),
                             p=[1.0 - p, p]).astype(np.float32)
    mask_ref = jnp.asarray(mask_np)[None, None, :, :]
    expected = noised * mask_ref + cover * (1.0 - mask_ref)
    np.testing.assert_allclose(np.asarray(out[0]), np.asarray(expected),
                               rtol=0.0, atol=0.0)

    # Second check: odd row count (N*C not a multiple of 8) exercises the
    # cdiv grid / masked partial block path.
    n3 = jax.random.normal(k1, (1, 3, H, W), dtype=jnp.float32)
    c3 = jax.random.normal(k2, (1, 3, H, W), dtype=jnp.float32)
    out3 = dropout_blend(n3, c3, jnp.asarray(mask_np))
    exp3 = n3 * mask_ref + c3 * (1.0 - mask_ref)
    np.testing.assert_allclose(np.asarray(out3), np.asarray(exp3),
                               rtol=0.0, atol=0.0)

    print("KERNEL_OK")
</pallas_src>

<mosaic_0001>
module attributes {stable_mosaic.version = 11 : i64} {
  func.func @_dropout_blend_kernel(%arg0: i32, %arg1: i32, %arg2: memref<8x256xf32, #tpu.memory_space<vmem>>, %arg3: memref<8x256xf32, #tpu.memory_space<vmem>>, %arg4: memref<1x256xf32, #tpu.memory_space<vmem>>, %arg5: memref<8x256xf32, #tpu.memory_space<vmem>>) attributes {dimension_semantics = [#tpu.dimension_semantics<parallel>, #tpu.dimension_semantics<parallel>], iteration_bounds = array<i64: 1, 1>, scalar_prefetch = 0 : i64, scratch_operands = 0 : i64, tpu.core_type = #tpu.core_type<tc>, window_params = [{transform_indices = @transform_0, window_bounds = array<i64: 8, 256>}, {transform_indices = @transform_1, window_bounds = array<i64: 8, 256>}, {transform_indices = @transform_2, window_bounds = array<i64: 1, 256>}, {transform_indices = @transform_3, window_bounds = array<i64: 8, 256>}]} {
    %c0 = arith.constant 0 : index
    %c0_0 = arith.constant 0 : index
    %0 = vector.load %arg2[%c0, %c0_0] : memref<8x256xf32, #tpu.memory_space<vmem>>, vector<8x256xf32>
    %c0_1 = arith.constant 0 : index
    %c0_2 = arith.constant 0 : index
    %1 = vector.load %arg3[%c0_1, %c0_2] : memref<8x256xf32, #tpu.memory_space<vmem>>, vector<8x256xf32>
    %c0_3 = arith.constant 0 : index
    %c0_4 = arith.constant 0 : index
    %2 = vector.load %arg4[%c0_3, %c0_4] : memref<1x256xf32, #tpu.memory_space<vmem>>, vector<1x256xf32>
    %cst = arith.constant 0.000000e+00 : f32
    %3 = vector.broadcast %cst : f32 to vector<1x256xf32>
    %4 = arith.cmpf one, %2, %3 : vector<1x256xf32>
    %5 = vector.shape_cast %4 : vector<1x256xi1> to vector<1x256xi1>
    %6 = vector.broadcast %5 : vector<1x256xi1> to vector<8x256xi1>
    %7 = arith.select %6, %0, %1 : vector<8x256xi1>, vector<8x256xf32>
    %c0_5 = arith.constant 0 : index
    %c0_6 = arith.constant 0 : index
    %8 = vector.load %arg5[%c0_5, %c0_6] : memref<8x256xf32, #tpu.memory_space<vmem>>, vector<8x256xf32>
    tpu.vector_store %arg5[%c0_5, %c0_6], %7 {strides = array<i32>} : memref<8x256xf32, #tpu.memory_space<vmem>>, vector<8x256xf32>,
    return
  }
  func.func @transform_0(%arg0: i32, %arg1: i32) -> (i32, i32) {
    %c0_i32 = arith.constant 0 : i32
    return %arg0, %arg1 : i32, i32
  }
  func.func @transform_1(%arg0: i32, %arg1: i32) -> (i32, i32) {
    %c0_i32 = arith.constant 0 : i32
    return %arg0, %arg1 : i32, i32
  }
  func.func @transform_2(%arg0: i32, %arg1: i32) -> (i32, i32) {
    %c0_i32 = arith.constant 0 : i32
    %c0_i32_0 = arith.constant 0 : i32
    return %c0_i32, %arg1 : i32, i32
  }
  func.func @transform_3(%arg0: i32, %arg1: i32) -> (i32, i32) {
    %c0_i32 = arith.constant 0 : i32
    return %arg0, %arg1 : i32, i32
  }
}

</mosaic_0001>

<llo_original>
// kernel: dropout_blend.1
$region0: #{dropout_blend.1}
  #allocation0 [shape = 'u32[]', space=smem, size = 0x4, offset = 0x4, fixed_abs, tag = 'smem constant byte address 0x4 - core index']
  #allocation1 [shape = 'u32[72,128]{1,0:T(1,128)}', space=vmem, size = 0x9000, scoped, tag = 'internal scratch']
  %s0 = inlined_call_operand.vmem [shape: f32[8,256], index: 0, kind: input, shape index: {}]
  %s1 = inlined_call_operand.vmem [shape: f32[8,256], index: 1, kind: input, shape index: {}]
  %s2 = inlined_call_operand.vmem [shape: f32[1,256], index: 2, kind: input, shape index: {}]
  %s3 = inlined_call_operand.vmem [shape: f32[8,256], index: 3, kind: output, shape index: {}]
  %s4 = sld [smem:[#allocation0]]
  $region22: #{dropout_blend.1} parent=0
    _
  %s6 = ssub.s32 1, %s4
  %s7 = scalar_select 0, %s6, %s4
  // Predicated region
  $region2: #{dropout_blend.1} parent=0 // pred_check
    _
  $region3: #{dropout_blend.1} parent=0 // pred_check_branch
    %9 = sbr.rel (0) target = $region5
  $region4: #{dropout_blend.1} parent=0 // pred_region
    _
  $region5: #{dropout_blend.1} parent=0 // pred_fallthru
    _
  // Predicated region
  $region6: #{dropout_blend.1} parent=0 // pred_check
    _
  $region7: #{dropout_blend.1} parent=0 // pred_check_branch
    %11 = sbr.rel (0) target = $region9
  $region8: #{dropout_blend.1} parent=0 // pred_region
    _
  $region9: #{dropout_blend.1} parent=0 // pred_fallthru
    _
  // Predicated region
  $region10: #{dropout_blend.1} parent=0 // pred_check
    _
  $region11: #{dropout_blend.1} parent=0 // pred_check_branch
    %13 = sbr.rel (0) target = $region13
  $region12: #{dropout_blend.1} parent=0 // pred_region
    _
  $region13: #{dropout_blend.1} parent=0 // pred_fallthru
    _
  %v14 = vld [vmem:[%s0] sm:$0xff]
  %v15 = vld [vmem:[%s0 + $0x8] sm:$0xff]
  %v16 = vld [vmem:[%s1] sm:$0xff]
  %v17 = vld [vmem:[%s1 + $0x8] sm:$0xff]
  %v18 = vld [vmem:[%s2] sm:$0x3]
  %vm19 = vcmp.ne.f32.partialorder %v18, 0.0
  %v20 = vsel %vm19, 1, 0
  %v21 = vperm.slane %v20, 0
  %v22 = vperm.slane %v20, 1
  %vm23 = vcmp.eq.s32.totalorder %v21, 1
  %vm24 = vcmp.eq.s32.totalorder %v22, 1
  %v25 = vsel %vm23, %v14, %v16
  %v26 = vsel %vm24, %v15, %v17
  %27 = vst [vmem:[%s3] sm:$0xff] %v25
  %28 = vst [vmem:[%s3 + $0x8] sm:$0xff] %v26
  // Predicated region
  $region14: #{dropout_blend.1} parent=0 // pred_check
    _
  $region15: #{dropout_blend.1} parent=0 // pred_check_branch
    %30 = sbr.rel (0) target = $region17
  $region16: #{dropout_blend.1} parent=0 // pred_region
    _
  $region17: #{dropout_blend.1} parent=0 // pred_fallthru
    _
  // Predicated region
  $region18: #{dropout_blend.1} parent=0 // pred_check
    _
  $region19: #{dropout_blend.1} parent=0 // pred_check_branch
    %32 = sbr.rel (0) target = $region21
  $region20: #{dropout_blend.1} parent=0 // pred_region
    _
  $region21: #{dropout_blend.1} parent=0 // pred_fallthru
    _

</llo_original>
